<compile_context>
chip_gen: v5e
topology: v5e:2x2
jax: 0.10.0
libtpu: 0.0.40
codegen_flags: <defaults>
</compile_context>

<pallas_src>
import functools

import jax
import jax.numpy as jnp
from jax.experimental import pallas as pl
from jax.experimental.pallas import tpu as pltpu


def _round_up(x, m):
    return (x + m - 1) // m * m


def _ce_label_smooth_kernel(x_ref, t_ref, out_ref,
                            m_sc, l_sc, sx_sc, xt_sc, *,
                            epsilon, num_classes, batch_size,
                            block_batch, block_classes, chunk_classes,
                            num_class_blocks):
    # x_ref:   (TB, TC) logits tile (any float dtype), VMEM
    # t_ref:   (TB, 1)  int32 labels tile, VMEM
    # out_ref: (TB, 1)  f32 per-row smoothed-CE loss (padded rows -> 0), VMEM
    # scratch: running max m, running sum-exp l, running sum_x, running x_tgt
    i = pl.program_id(0)          # batch-tile index ("parallel")
    j = pl.program_id(1)          # class-tile index ("arbitrary" reduction)

    @pl.when(j == 0)
    def _init():
        m_sc[...] = jnp.full_like(m_sc, -jnp.inf)
        l_sc[...] = jnp.zeros_like(l_sc)
        sx_sc[...] = jnp.zeros_like(sx_sc)
        xt_sc[...] = jnp.zeros_like(xt_sc)

    tgt = t_ref[...]                                               # (TB, 1) i32
    n_chunks = block_classes // chunk_classes
    col_base = j * block_classes
    # Hoisted once per grid step; per-chunk column ids = iota + scalar offset.
    col_iota = jax.lax.broadcasted_iota(
        jnp.int32, (block_batch, chunk_classes), 1)

    # TODO(synk): on v6e/v7x keep the x_tgt select and sum_x inputs in bf16
    # (f32 accumulate) to halve vreg traffic; v5e has no bf16 VPU.

    # ---- pass 1: block max / sum_x / x_tgt (first read of the tile) --------
    def pass1(c, carry):
        bmax, bsum, btgt = carry
        off = pl.multiple_of(c * chunk_classes, chunk_classes)
        xc = x_ref[:, pl.ds(off, chunk_classes)].astype(jnp.float32)
        col = col_iota + (col_base + off)
        valid = col < num_classes            # masks host pad + block overhang
        bmax = jnp.maximum(
            bmax,
            jnp.max(jnp.where(valid, xc, -jnp.inf), axis=1, keepdims=True))
        bsum = bsum + jnp.sum(jnp.where(valid, xc, 0.0), axis=1, keepdims=True)
        # col == tgt is never true for col >= num_classes, so no extra mask.
        btgt = btgt + jnp.sum(jnp.where(col == tgt, xc, 0.0),
                              axis=1, keepdims=True)
        return bmax, bsum, btgt

    init = (jnp.full((block_batch, 1), -jnp.inf, jnp.float32),
            jnp.zeros((block_batch, 1), jnp.float32),
            jnp.zeros((block_batch, 1), jnp.float32))
    bmax, bsum, btgt = jax.lax.fori_loop(0, n_chunks, pass1, init,
                                         unroll=n_chunks <= 8)

    m_old = m_sc[...]
    m_new = jnp.maximum(m_old, bmax)

    # ---- pass 2: sum(exp(x - m_new)) (second and last read of the tile) ----
    def pass2(c, acc):
        off = pl.multiple_of(c * chunk_classes, chunk_classes)
        xc = x_ref[:, pl.ds(off, chunk_classes)].astype(jnp.float32)
        col = col_iota + (col_base + off)
        e = jnp.where(col < num_classes, jnp.exp(xc - m_new), 0.0)
        return acc + jnp.sum(e, axis=1, keepdims=True)

    bexp = jax.lax.fori_loop(0, n_chunks, pass2,
                             jnp.zeros((block_batch, 1), jnp.float32),
                             unroll=n_chunks <= 8)

    # Online logsumexp update.
    l_sc[...] = l_sc[...] * jnp.exp(m_old - m_new) + bexp
    m_sc[...] = m_new
    sx_sc[...] = sx_sc[...] + bsum
    xt_sc[...] = xt_sc[...] + btgt

    # ---- finalize once per batch tile (last class tile) --------------------
    @pl.when(j == num_class_blocks - 1)
    def _fin():
        per_sample = ((m_sc[...] + jnp.log(l_sc[...]))
                      - (1.0 - epsilon) * xt_sc[...]
                      - (epsilon / num_classes) * sx_sc[...])
        # True select (not arithmetic masking) so garbage/NaN pad rows cannot
        # leak into the mean.
        row_ids = (i * block_batch
                   + jax.lax.broadcasted_iota(jnp.int32, per_sample.shape, 0))
        out_ref[...] = jnp.where(row_ids < batch_size, per_sample, 0.0)


def ce_label_smooth(inputs, targets, *, epsilon=0.1, reduction=True,
                    max_block_batch=1024, max_block_classes=2048):
    """inputs: (B, C) float logits; targets: (B,) int labels.

    Returns scalar f32 mean loss (reduction=True) or per-sample (B,) losses.
    """
    B, C = inputs.shape
    itemsize = jnp.dtype(inputs.dtype).itemsize

    # Pad the class axis to a lane multiple so every class tile is 128-aligned;
    # pad columns are masked in-kernel, so the pad value does not matter.
    c_pad = _round_up(C, 128)
    if c_pad != C:
        inputs = jnp.pad(inputs, ((0, 0), (0, c_pad - C)))

    # Tiny-batch corner case: keep the sublane block dim legal.
    b_rows = B
    if B < 8:
        inputs = jnp.pad(inputs, ((0, 8 - B), (0, 0)))
        targets = jnp.pad(targets, ((0, 8 - B),))
        b_rows = 8

    # Class tile and in-tile chunk width (chunk must divide the tile).
    tc = min(c_pad, _round_up(int(max_block_classes), 128))
    if tc % 512 == 0:
        cw = 512
    elif tc % 256 == 0:
        cw = 256
    else:
        cw = 128
    cw = min(cw, tc)

    # VMEM budget: double-buffered logits tile + chunk-sized f32/i32 temps
    # (chunk copy, masked variants, exp, iota, ...) + small scratch.
    try:
        vmem_cap = int(pltpu.get_tpu_info().vmem_capacity_bytes)
    except Exception:
        vmem_cap = 64 * 1024 * 1024            # conservative (v7x-sized)
    vmem_limit = min(100 * 1024 * 1024, (vmem_cap * 3) // 4)
    budget = vmem_limit - 4 * 1024 * 1024
    bytes_per_row = 2 * tc * itemsize + 8 * cw * 4 + 64
    tb = max(8, min(int(max_block_batch), budget // bytes_per_row))
    tb = max(8, (tb // 8) * 8)
    tb = min(tb, _round_up(b_rows, 8))
    if b_rows > 8:
        # Keep at least two batch tiles so both v7x TensorCores get work.
        tb = min(tb, _round_up(pl.cdiv(b_rows, 2), 8))
    tb = max(8, tb)

    nb = pl.cdiv(b_rows, tb)
    ncb = pl.cdiv(c_pad, tc)
    b_padded = nb * tb

    targets_col = targets.astype(jnp.int32).reshape(-1, 1)

    kernel = functools.partial(
        _ce_label_smooth_kernel,
        epsilon=float(epsilon), num_classes=C, batch_size=B,
        block_batch=tb, block_classes=tc, chunk_classes=cw,
        num_class_blocks=ncb)

    # TODO(synk): if xprof shows exposed DMA on v5e, set
    # pipeline_mode=pl.Buffered(3) on the logits BlockSpec.
    per_row = pl.pallas_call(
        kernel,
        out_shape=jax.ShapeDtypeStruct((b_padded, 1), jnp.float32),
        grid=(nb, ncb),
        in_specs=[
            pl.BlockSpec((tb, tc), lambda i, j: (i, j)),   # logits tile
            pl.BlockSpec((tb, 1), lambda i, j: (i, 0)),    # labels tile
        ],
        out_specs=pl.BlockSpec((tb, 1), lambda i, j: (i, 0)),
        scratch_shapes=[pltpu.VMEM((tb, 1), jnp.float32)] * 4,
        compiler_params=pltpu.CompilerParams(
            dimension_semantics=("parallel", "arbitrary"),
            vmem_limit_bytes=int(vmem_limit),
        ),
    )(inputs, targets_col)

    if reduction:
        return jnp.sum(per_row) / B            # padded rows were written as 0
    return per_row[:B, 0]


if __name__ == "__main__":
    key = jax.random.PRNGKey(0)
    k1, k2, k3, k4 = jax.random.split(key, 4)

    def reference_rows(logits, labels, eps):
        logits = logits.astype(jnp.float32)
        num_classes = logits.shape[1]
        log_probs = jax.nn.log_softmax(logits, axis=1)
        one_hot = jax.nn.one_hot(labels, num_classes, dtype=jnp.float32)
        smooth = (1.0 - eps) * one_hot + eps / num_classes
        return jnp.sum(-smooth * log_probs, axis=1)

    eps = 0.1

    # Test 1: small shapes; C not a multiple of 128 and B not a multiple of 8,
    # so the class-pad mask, partial batch tile and a 2-step batch grid run.
    B1, C1 = 20, 37
    x1 = jax.random.normal(k1, (B1, C1), dtype=jnp.float32)
    y1 = jax.random.randint(k2, (B1,), 0, C1, dtype=jnp.int32)
    got_mean = jax.block_until_ready(ce_label_smooth(x1, y1, epsilon=eps))
    got_rows = jax.block_until_ready(
        ce_label_smooth(x1, y1, epsilon=eps, reduction=False))
    ref_rows = reference_rows(x1, y1, eps)
    assert jnp.allclose(got_mean, jnp.mean(ref_rows), atol=1e-5, rtol=1e-5), (
        got_mean, jnp.mean(ref_rows))
    assert jnp.allclose(got_rows, ref_rows, atol=1e-5, rtol=1e-5)

    # Test 2: bf16 logits with a forced multi-tile class axis -> exercises the
    # online-logsumexp accumulation across class tiles and the inline upcast.
    B2, C2 = 24, 300
    x2 = jax.random.normal(k3, (B2, C2), dtype=jnp.float32).astype(jnp.bfloat16)
    y2 = jax.random.randint(k4, (B2,), 0, C2, dtype=jnp.int32)
    got2 = jax.block_until_ready(
        ce_label_smooth(x2, y2, epsilon=eps, max_block_classes=128))
    ref2 = jnp.mean(reference_rows(x2, y2, eps))
    assert jnp.allclose(got2, ref2, atol=1e-3, rtol=1e-3), (got2, ref2)

    print("KERNEL_OK")
</pallas_src>

<mosaic_0001>
module attributes {stable_mosaic.version = 11 : i64} {
  func.func @_ce_label_smooth_kernel(%arg0: i32, %arg1: i32, %arg2: memref<16x128xf32, #tpu.memory_space<vmem>>, %arg3: memref<16x1xi32, #tpu.memory_space<vmem>>, %arg4: memref<16x1xf32, #tpu.memory_space<vmem>>, %arg5: memref<16x1xf32, #tpu.memory_space<vmem>>, %arg6: memref<16x1xf32, #tpu.memory_space<vmem>>, %arg7: memref<16x1xf32, #tpu.memory_space<vmem>>, %arg8: memref<16x1xf32, #tpu.memory_space<vmem>>) attributes {dimension_semantics = [#tpu.dimension_semantics<parallel>, #tpu.dimension_semantics<arbitrary>], iteration_bounds = array<i64: 2, 1>, scalar_prefetch = 0 : i64, scratch_operands = 4 : i64, tpu.core_type = #tpu.core_type<tc>, window_params = [{transform_indices = @transform_0, window_bounds = array<i64: 16, 128>}, {transform_indices = @transform_1, window_bounds = array<i64: 16, 1>}, {transform_indices = @transform_2, window_bounds = array<i64: 16, 1>}]} {
    %c0_i32 = arith.constant 0 : i32
    %0 = arith.cmpi eq, %arg1, %c0_i32 : i32
    %1 = arith.extui %0 : i1 to i32
    %c0_i32_0 = arith.constant 0 : i32
    %2 = arith.cmpi ne, %1, %c0_i32_0 : i32
    scf.if %2 {
      %cst_39 = arith.constant 0xFF800000 : f32
      %71 = vector.broadcast %cst_39 : f32 to vector<16x1xf32>
      %c0_40 = arith.constant 0 : index
      %c0_41 = arith.constant 0 : index
      %72 = vector.load %arg5[%c0_40, %c0_41] : memref<16x1xf32, #tpu.memory_space<vmem>>, vector<16x1xf32>
      tpu.vector_store %arg5[%c0_40, %c0_41], %71 {strides = array<i32>} : memref<16x1xf32, #tpu.memory_space<vmem>>, vector<16x1xf32>,
      %cst_42 = arith.constant 0.000000e+00 : f32
      %73 = vector.broadcast %cst_42 : f32 to vector<16x1xf32>
      %c0_43 = arith.constant 0 : index
      %c0_44 = arith.constant 0 : index
      %74 = vector.load %arg6[%c0_43, %c0_44] : memref<16x1xf32, #tpu.memory_space<vmem>>, vector<16x1xf32>
      tpu.vector_store %arg6[%c0_43, %c0_44], %73 {strides = array<i32>} : memref<16x1xf32, #tpu.memory_space<vmem>>, vector<16x1xf32>,
      %cst_45 = arith.constant 0.000000e+00 : f32
      %75 = vector.broadcast %cst_45 : f32 to vector<16x1xf32>
      %c0_46 = arith.constant 0 : index
      %c0_47 = arith.constant 0 : index
      %76 = vector.load %arg7[%c0_46, %c0_47] : memref<16x1xf32, #tpu.memory_space<vmem>>, vector<16x1xf32>
      tpu.vector_store %arg7[%c0_46, %c0_47], %75 {strides = array<i32>} : memref<16x1xf32, #tpu.memory_space<vmem>>, vector<16x1xf32>,
      %cst_48 = arith.constant 0.000000e+00 : f32
      %77 = vector.broadcast %cst_48 : f32 to vector<16x1xf32>
      %c0_49 = arith.constant 0 : index
      %c0_50 = arith.constant 0 : index
      %78 = vector.load %arg8[%c0_49, %c0_50] : memref<16x1xf32, #tpu.memory_space<vmem>>, vector<16x1xf32>
      tpu.vector_store %arg8[%c0_49, %c0_50], %77 {strides = array<i32>} : memref<16x1xf32, #tpu.memory_space<vmem>>, vector<16x1xf32>,
    } else {
    }
    %c0 = arith.constant 0 : index
    %c0_1 = arith.constant 0 : index
    %3 = vector.load %arg3[%c0, %c0_1] : memref<16x1xi32, #tpu.memory_space<vmem>>, vector<16x1xi32>
    %c128_i32 = arith.constant 128 : i32
    %4 = arith.muli %arg1, %c128_i32 : i32
    %5 = tpu.iota {dimensions = array<i32: 1>} : vector<16x128xi32>
    %cst = arith.constant 0xFF800000 : f32
    %6 = vector.broadcast %cst : f32 to vector<16x1xf32>
    %cst_2 = arith.constant 0.000000e+00 : f32
    %7 = vector.broadcast %cst_2 : f32 to vector<16x1xf32>
    %cst_3 = arith.constant 0.000000e+00 : f32
    %8 = vector.broadcast %cst_3 : f32 to vector<16x1xf32>
    %c0_i32_4 = arith.constant 0 : i32
    %c128_i32_5 = arith.constant 128 : i32
    %9 = arith.muli %c0_i32_4, %c128_i32_5 : i32
    %10 = tpu.assume_multiple %9, 128 : i32
    %c0_6 = arith.constant 0 : index
    %11 = arith.index_cast %10 : i32 to index
    %12 = vector.load %arg2[%c0_6, %11] : memref<16x128xf32, #tpu.memory_space<vmem>>, vector<16x128xf32>
    %13 = arith.addi %4, %10 : i32
    %14 = vector.broadcast %13 : i32 to vector<16x128xi32>
    %15 = arith.addi %5, %14 : vector<16x128xi32>
    %c37_i32 = arith.constant 37 : i32
    %16 = vector.broadcast %c37_i32 : i32 to vector<16x128xi32>
    %17 = arith.cmpi slt, %15, %16 : vector<16x128xi32>
    %cst_7 = arith.constant 0xFF800000 : f32
    %18 = vector.broadcast %cst_7 : f32 to vector<16x128xf32>
    %19 = arith.select %17, %12, %18 : vector<16x128xi1>, vector<16x128xf32>
    %cst_8 = arith.constant dense<0xFF800000> : vector<16xf32>
    %20 = vector.multi_reduction <maximumf>, %19, %cst_8 [1] : vector<16x128xf32> to vector<16xf32>
    %21 = vector.shape_cast %20 : vector<16xf32> to vector<16x1xf32>
    %22 = arith.maximumf %6, %21 : vector<16x1xf32>
    %cst_9 = arith.constant 0.000000e+00 : f32
    %23 = vector.broadcast %cst_9 : f32 to vector<16x128xf32>
    %24 = arith.select %17, %12, %23 : vector<16x128xi1>, vector<16x128xf32>
    %cst_10 = arith.constant dense<0.000000e+00> : vector<16xf32>
    %25 = vector.multi_reduction <add>, %24, %cst_10 [1] : vector<16x128xf32> to vector<16xf32>
    %26 = vector.shape_cast %25 : vector<16xf32> to vector<16x1xf32>
    %27 = arith.addf %7, %26 : vector<16x1xf32>
    %28 = vector.broadcast %3 : vector<16x1xi32> to vector<16x128xi32>
    %29 = arith.cmpi eq, %15, %28 : vector<16x128xi32>
    %cst_11 = arith.constant 0.000000e+00 : f32
    %30 = vector.broadcast %cst_11 : f32 to vector<16x128xf32>
    %31 = arith.select %29, %12, %30 : vector<16x128xi1>, vector<16x128xf32>
    %cst_12 = arith.constant dense<0.000000e+00> : vector<16xf32>
    %32 = vector.multi_reduction <add>, %31, %cst_12 [1] : vector<16x128xf32> to vector<16xf32>
    %33 = vector.shape_cast %32 : vector<16xf32> to vector<16x1xf32>
    %34 = arith.addf %8, %33 : vector<16x1xf32>
    %c1_i32 = arith.constant 1 : i32
    %c0_13 = arith.constant 0 : index
    %c0_14 = arith.constant 0 : index
    %35 = vector.load %arg5[%c0_13, %c0_14] : memref<16x1xf32, #tpu.memory_space<vmem>>, vector<16x1xf32>
    %36 = arith.maximumf %35, %22 : vector<16x1xf32>
    %cst_15 = arith.constant 0.000000e+00 : f32
    %37 = vector.broadcast %cst_15 : f32 to vector<16x1xf32>
    %c0_i32_16 = arith.constant 0 : i32
    %c128_i32_17 = arith.constant 128 : i32
    %38 = arith.muli %c0_i32_16, %c128_i32_17 : i32
    %39 = tpu.assume_multiple %38, 128 : i32
    %c0_18 = arith.constant 0 : index
    %40 = arith.index_cast %39 : i32 to index
    %41 = vector.load %arg2[%c0_18, %40] : memref<16x128xf32, #tpu.memory_space<vmem>>, vector<16x128xf32>
    %42 = arith.addi %4, %39 : i32
    %43 = vector.broadcast %42 : i32 to vector<16x128xi32>
    %44 = arith.addi %5, %43 : vector<16x128xi32>
    %c37_i32_19 = arith.constant 37 : i32
    %45 = vector.broadcast %c37_i32_19 : i32 to vector<16x128xi32>
    %46 = arith.cmpi slt, %44, %45 : vector<16x128xi32>
    %47 = vector.broadcast %36 : vector<16x1xf32> to vector<16x128xf32>
    %48 = arith.subf %41, %47 : vector<16x128xf32>
    %49 = math.exp %48 : vector<16x128xf32>
    %cst_20 = arith.constant 0.000000e+00 : f32
    %50 = vector.broadcast %cst_20 : f32 to vector<16x128xf32>
    %51 = arith.select %46, %49, %50 : vector<16x128xi1>, vector<16x128xf32>
    %cst_21 = arith.constant dense<0.000000e+00> : vector<16xf32>
    %52 = vector.multi_reduction <add>, %51, %cst_21 [1] : vector<16x128xf32> to vector<16xf32>
    %53 = vector.shape_cast %52 : vector<16xf32> to vector<16x1xf32>
    %54 = arith.addf %37, %53 : vector<16x1xf32>
    %c1_i32_22 = arith.constant 1 : i32
    %c0_23 = arith.constant 0 : index
    %c0_24 = arith.constant 0 : index
    %55 = vector.load %arg6[%c0_23, %c0_24] : memref<16x1xf32, #tpu.memory_space<vmem>>, vector<16x1xf32>
    %56 = arith.subf %35, %36 : vector<16x1xf32>
    %57 = math.exp %56 : vector<16x1xf32>
    %58 = arith.mulf %55, %57 : vector<16x1xf32>
    %59 = arith.addf %58, %54 : vector<16x1xf32>
    %c0_25 = arith.constant 0 : index
    %c0_26 = arith.constant 0 : index
    %60 = vector.load %arg6[%c0_25, %c0_26] : memref<16x1xf32, #tpu.memory_space<vmem>>, vector<16x1xf32>
    tpu.vector_store %arg6[%c0_25, %c0_26], %59 {strides = array<i32>} : memref<16x1xf32, #tpu.memory_space<vmem>>, vector<16x1xf32>,
    %c0_27 = arith.constant 0 : index
    %c0_28 = arith.constant 0 : index
    %61 = vector.load %arg5[%c0_27, %c0_28] : memref<16x1xf32, #tpu.memory_space<vmem>>, vector<16x1xf32>
    tpu.vector_store %arg5[%c0_27, %c0_28], %36 {strides = array<i32>} : memref<16x1xf32, #tpu.memory_space<vmem>>, vector<16x1xf32>,
    %c0_29 = arith.constant 0 : index
    %c0_30 = arith.constant 0 : index
    %62 = vector.load %arg7[%c0_29, %c0_30] : memref<16x1xf32, #tpu.memory_space<vmem>>, vector<16x1xf32>
    %63 = arith.addf %62, %27 : vector<16x1xf32>
    %c0_31 = arith.constant 0 : index
    %c0_32 = arith.constant 0 : index
    %64 = vector.load %arg7[%c0_31, %c0_32] : memref<16x1xf32, #tpu.memory_space<vmem>>, vector<16x1xf32>
    tpu.vector_store %arg7[%c0_31, %c0_32], %63 {strides = array<i32>} : memref<16x1xf32, #tpu.memory_space<vmem>>, vector<16x1xf32>,
    %c0_33 = arith.constant 0 : index
    %c0_34 = arith.constant 0 : index
    %65 = vector.load %arg8[%c0_33, %c0_34] : memref<16x1xf32, #tpu.memory_space<vmem>>, vector<16x1xf32>
    %66 = arith.addf %65, %34 : vector<16x1xf32>
    %c0_35 = arith.constant 0 : index
    %c0_36 = arith.constant 0 : index
    %67 = vector.load %arg8[%c0_35, %c0_36] : memref<16x1xf32, #tpu.memory_space<vmem>>, vector<16x1xf32>
    tpu.vector_store %arg8[%c0_35, %c0_36], %66 {strides = array<i32>} : memref<16x1xf32, #tpu.memory_space<vmem>>, vector<16x1xf32>,
    %c0_i32_37 = arith.constant 0 : i32
    %68 = arith.cmpi eq, %arg1, %c0_i32_37 : i32
    %69 = arith.extui %68 : i1 to i32
    %c0_i32_38 = arith.constant 0 : i32
    %70 = arith.cmpi ne, %69, %c0_i32_38 : i32
    scf.if %70 {
      %c0_39 = arith.constant 0 : index
      %c0_40 = arith.constant 0 : index
      %71 = vector.load %arg5[%c0_39, %c0_40] : memref<16x1xf32, #tpu.memory_space<vmem>>, vector<16x1xf32>
      %c0_41 = arith.constant 0 : index
      %c0_42 = arith.constant 0 : index
      %72 = vector.load %arg6[%c0_41, %c0_42] : memref<16x1xf32, #tpu.memory_space<vmem>>, vector<16x1xf32>
      %73 = math.log %72 : vector<16x1xf32>
      %74 = arith.addf %71, %73 : vector<16x1xf32>
      %c0_43 = arith.constant 0 : index
      %c0_44 = arith.constant 0 : index
      %75 = vector.load %arg8[%c0_43, %c0_44] : memref<16x1xf32, #tpu.memory_space<vmem>>, vector<16x1xf32>
      %cst_45 = arith.constant 0.899999976 : f32
      %76 = vector.broadcast %cst_45 : f32 to vector<16x1xf32>
      %77 = arith.mulf %76, %75 : vector<16x1xf32>
      %78 = arith.subf %74, %77 : vector<16x1xf32>
      %c0_46 = arith.constant 0 : index
      %c0_47 = arith.constant 0 : index
      %79 = vector.load %arg7[%c0_46, %c0_47] : memref<16x1xf32, #tpu.memory_space<vmem>>, vector<16x1xf32>
      %cst_48 = arith.constant 0.00270270277 : f32
      %80 = vector.broadcast %cst_48 : f32 to vector<16x1xf32>
      %81 = arith.mulf %80, %79 : vector<16x1xf32>
      %82 = arith.subf %78, %81 : vector<16x1xf32>
      %c16_i32 = arith.constant 16 : i32
      %83 = arith.muli %arg0, %c16_i32 : i32
      %84 = tpu.iota {dimensions = array<i32: 0>} : vector<16x1xi32>
      %85 = vector.broadcast %83 : i32 to vector<16x1xi32>
      %86 = arith.addi %85, %84 : vector<16x1xi32>
      %c20_i32 = arith.constant 20 : i32
      %87 = vector.broadcast %c20_i32 : i32 to vector<16x1xi32>
      %88 = arith.cmpi slt, %86, %87 : vector<16x1xi32>
      %cst_49 = arith.constant 0.000000e+00 : f32
      %89 = vector.broadcast %cst_49 : f32 to vector<16x1xf32>
      %90 = arith.select %88, %82, %89 : vector<16x1xi1>, vector<16x1xf32>
      %c0_50 = arith.constant 0 : index
      %c0_51 = arith.constant 0 : index
      %91 = vector.load %arg4[%c0_50, %c0_51] : memref<16x1xf32, #tpu.memory_space<vmem>>, vector<16x1xf32>
      tpu.vector_store %arg4[%c0_50, %c0_51], %90 {strides = array<i32>} : memref<16x1xf32, #tpu.memory_space<vmem>>, vector<16x1xf32>,
    } else {
    }
    return
  }
  func.func @transform_0(%arg0: i32, %arg1: i32) -> (i32, i32) {
    %c0_i32 = arith.constant 0 : i32
    return %arg0, %arg1 : i32, i32
  }
  func.func @transform_1(%arg0: i32, %arg1: i32) -> (i32, i32) {
    %c0_i32 = arith.constant 0 : i32
    %c0_i32_0 = arith.constant 0 : i32
    return %arg0, %c0_i32 : i32, i32
  }
  func.func @transform_2(%arg0: i32, %arg1: i32) -> (i32, i32) {
    %c0_i32 = arith.constant 0 : i32
    %c0_i32_0 = arith.constant 0 : i32
    return %arg0, %c0_i32 : i32, i32
  }
}

</mosaic_0001>

<llo_original>
// kernel: tpu_custom_call.1
$region0: #{tpu_custom_call.1}
  #allocation0 [shape = 'u32[]', space=smem, size = 0x4, offset = 0x4, fixed_abs, tag = 'smem constant byte address 0x4 - core index']
  #allocation1 [shape = 'u32[72,128]{1,0:T(1,128)}', space=vmem, size = 0x9000, scoped, tag = 'internal scratch']
  #allocation2 [shape = 'f32[16,1]{1,0:T(8,128)}', space=vmem, size = 0x2000, scoped, tag = 'scratch operand']
  #allocation3 [shape = 'f32[16,1]{1,0:T(8,128)}', space=vmem, size = 0x2000, scoped, tag = 'scratch operand']
  #allocation4 [shape = 'f32[16,1]{1,0:T(8,128)}', space=vmem, size = 0x2000, scoped, tag = 'scratch operand']
  #allocation5 [shape = 'f32[16,1]{1,0:T(8,128)}', space=vmem, size = 0x2000, scoped, tag = 'scratch operand']
  %s0 = inlined_call_operand.vmem [shape: f32[20,128], index: 0, kind: input, shape index: {}]
  %s1 = inlined_call_operand.vmem [shape: s32[20,1], index: 1, kind: input, shape index: {}]
  %s2 = inlined_call_operand.vmem [shape: f32[32,1], index: 2, kind: output, shape index: {}]
  %s3 = sld [smem:[#allocation0]]
  $region49: #{tpu_custom_call.1} parent=0
    _
  %s5 = ssub.s32 1, %s3
  %s6 = scalar_select 0, %s5, %s3
  loop: start=0, step=1, limit=4
  $region2: #{tpu_custom_call.1} parent=0 // loop_pre_header
    _
  $region3: #{tpu_custom_call.1} parent=0 // loop_header
    %s8 = sphi 0, %s12
    %p9 = scmp.ge.s32.totalorder %s8, 4
    %s15 = sphi 0, %s27
    %s16 = sphi 0, %s23
    %s17 = sphi 0, %s15
    %s18 = sphi 0, %s16
    %s19 = sphi 0, %s17
    %s20 = sphi 0, %s18
    %s32 = sphi 0, %s34
    %s35 = sphi 0, %s32
    %s36 = sphi 0, %s35
    %s52 = sphi 0, %s36
    %s58 = sphi 0, %s60
    %s61 = sphi 0, %s58
    %s62 = sphi 0, %s61
    %s78 = sphi 0, %s62
    %s84 = sphi 0, %s86
    %s87 = sphi 0, %s84
    %s88 = sphi 0, %s87
    %s104 = sphi 0, %s88
  $region4: #{tpu_custom_call.1} parent=0 // loop_header_branch
    %11 = sbr.rel (%p9) target = $region8
  $region5: #{tpu_custom_call.1} parent=0 // loop_body
    %s13 = ssub.s32 %s8, 1
    %s14 = ssub.s32 %s8, 2
    %s21 = sadd.s32 1, %s16
    %p22 = scmp.ge.s32.totalorder %s21, 1
    %s23 = scalar_select %p22, 0, %s21
    %s24 = sadd.s32 1, %s15
    %s25 = scalar_select %p22, %s24, %s15
    %p26 = scmp.ge.s32.totalorder %s25, 2
    %s27 = scalar_select %p26, 0, %s25
    %s28 = ssub.s32 %s15, %s27
    %s29 = ssub.s32 %s16, %s23
    %s30 = sor.u32 %s28, %s29
    %p31 = scmp.eq.s32.totalorder %s30, 0
    %s33 = sadd.s32 %s32, 1
    %s34 = scalar_select %p31, %s32, %s33
    %p37 = pneg %p31
    %p38 = scmp.eq.s32.totalorder %s8, 1
    %p39 = por %p37, %p38
    %p40 = scmp.ne.s32.totalorder %s32, %s35
    %p41 = scmp.eq.s32.totalorder %s8, 0
    %p42 = por %p40, %p41
    %p43 = scmp.ne.s32.totalorder %s32, %s35
    %p44 = scmp.eq.s32.totalorder %s13, 1
    %p45 = por %p43, %p44
    %p46 = scmp.ne.s32.totalorder %s35, %s36
    %p47 = scmp.eq.s32.totalorder %s13, 0
    %p48 = por %p46, %p47
    %p49 = scmp.ne.s32.totalorder %s35, %s36
    %p50 = scmp.eq.s32.totalorder %s14, 1
    %p51 = por %p49, %p50
    %p53 = scmp.ne.s32.totalorder %s36, %s52
    %p54 = scmp.eq.s32.totalorder %s14, 0
    %p55 = por %p53, %p54
    %s56 = ssub.s32 %s15, %s27
    %p57 = scmp.eq.s32.totalorder %s56, 0
    %s59 = sadd.s32 %s58, 1
    %s60 = scalar_select %p57, %s58, %s59
    %p63 = pneg %p57
    %p64 = scmp.eq.s32.totalorder %s8, 1
    %p65 = por %p63, %p64
    %p66 = scmp.ne.s32.totalorder %s58, %s61
    %p67 = scmp.eq.s32.totalorder %s8, 0
    %p68 = por %p66, %p67
    %p69 = scmp.ne.s32.totalorder %s58, %s61
    %p70 = scmp.eq.s32.totalorder %s13, 1
    %p71 = por %p69, %p70
    %p72 = scmp.ne.s32.totalorder %s61, %s62
    %p73 = scmp.eq.s32.totalorder %s13, 0
    %p74 = por %p72, %p73
    %p75 = scmp.ne.s32.totalorder %s61, %s62
    %p76 = scmp.eq.s32.totalorder %s14, 1
    %p77 = por %p75, %p76
    %p79 = scmp.ne.s32.totalorder %s62, %s78
    %p80 = scmp.eq.s32.totalorder %s14, 0
    %p81 = por %p79, %p80
    %s82 = ssub.s32 %s15, %s27
    %p83 = scmp.eq.s32.totalorder %s82, 0
    %s85 = sadd.s32 %s84, 1
    %s86 = scalar_select %p83, %s84, %s85
    %p89 = pneg %p83
    %p90 = scmp.eq.s32.totalorder %s8, 1
    %p91 = por %p89, %p90
    %p92 = scmp.ne.s32.totalorder %s84, %s87
    %p93 = scmp.eq.s32.totalorder %s8, 0
    %p94 = por %p92, %p93
    %p95 = scmp.ne.s32.totalorder %s84, %s87
    %p96 = scmp.eq.s32.totalorder %s13, 1
    %p97 = por %p95, %p96
    %p98 = scmp.ne.s32.totalorder %s87, %s88
    %p99 = scmp.eq.s32.totalorder %s13, 0
    %p100 = por %p98, %p99
    %p101 = scmp.ne.s32.totalorder %s87, %s88
    %p102 = scmp.eq.s32.totalorder %s14, 1
    %p103 = por %p101, %p102
    %p105 = scmp.ne.s32.totalorder %s88, %s104
    %p106 = scmp.eq.s32.totalorder %s14, 0
    %p107 = por %p105, %p106
    %p108 = scmp.le.s32.totalorder 1, %s8
    %p109 = scmp.lt.s32.totalorder %s8, 3
    %p110 = pnand %p108, %p109
    %p111 = pneg %p110
    // Predicated region
    $region9: #{tpu_custom_call.1} parent=5 // pred_check
      _
    $region10: #{tpu_custom_call.1} parent=5 // pred_check_branch
      %113 = sbr.rel (%p110) target = $region12
    $region11: #{tpu_custom_call.1} parent=5 // pred_region
      %s114 = ssub.s32 %s8, 1
    $region12: #{tpu_custom_call.1} parent=5 // pred_fallthru
      _
    %p115 = scmp.lt.s32.totalorder %s8, 2
    // Predicated region
    $region13: #{tpu_custom_call.1} parent=5 // pred_check
      %p116 = pneg %p115
    $region14: #{tpu_custom_call.1} parent=5 // pred_check_branch
      %118 = sbr.rel (%p116) target = $region16
    $region15: #{tpu_custom_call.1} parent=5 // pred_region
      // Predicated region
      $region17: #{tpu_custom_call.1} parent=15 // pred_check
        %p119 = pneg %p42
      $region18: #{tpu_custom_call.1} parent=15 // pred_check_branch
        %121 = sbr.rel (%p119) target = $region20
      $region19: #{tpu_custom_call.1} parent=15 // pred_region
        %s122 = smul.u32 2, %s15
        %s123 = ssub.s32 3, %s122
        %p124 = scmp.lt.s32.totalorder %s123, 2
        %s125 = scalar_select %p124, %s123, 2
        %s126 = smul.u32 8, %s125
        %p127 = scmp.lt.s32.totalorder %s122, 2
        %s128 = scalar_select %p127, %s122, 2
        %p129 = scmp.lt.s32.totalorder %s16, 0
        %s130 = scalar_select %p129, %s16, 0
        %s131 = sadd.s32 %s130, %s128
        %s132 = smul.addr %s131, 8
        %s133 = scalar_lea.vmem %s0, %s132
        %s134 = smul.u32 2, %s15
        %s135 = ssub.s32 3, %s134
        %p136 = scmp.lt.s32.totalorder %s135, 2
        %s137 = scalar_select %p136, %s135, 2
        %s138 = smul.u32 8, %s137
      $region20: #{tpu_custom_call.1} parent=15 // pred_fallthru
        _
      // Predicated region
      $region21: #{tpu_custom_call.1} parent=15 // pred_check
        %p139 = pneg %p68
      $region22: #{tpu_custom_call.1} parent=15 // pred_check_branch
        %141 = sbr.rel (%p139) target = $region24
      $region23: #{tpu_custom_call.1} parent=15 // pred_region
        %s142 = smul.u32 2, %s15
        %s143 = ssub.s32 3, %s142
        %p144 = scmp.lt.s32.totalorder %s143, 2
        %s145 = scalar_select %p144, %s143, 2
        %s146 = smul.u32 8, %s145
        %p147 = scmp.lt.s32.totalorder %s142, 2
        %s148 = scalar_select %p147, %s142, 2
        %s149 = smul.addr %s148, 8
        %s150 = scalar_lea.vmem %s1, %s149
        %s151 = smul.u32 2, %s15
        %s152 = ssub.s32 3, %s151
        %p153 = scmp.lt.s32.totalorder %s152, 2
        %s154 = scalar_select %p153, %s152, 2
        %s155 = smul.u32 8, %s154
      $region24: #{tpu_custom_call.1} parent=15 // pred_fallthru
        _
    $region16: #{tpu_custom_call.1} parent=5 // pred_fallthru
      _
    %p156 = scmp.le.s32.totalorder 1, %s8
    %p157 = scmp.lt.s32.totalorder %s8, 3
    %p158 = pnand %p156, %p157
    %p159 = pneg %p158
    // Predicated region
    $region25: #{tpu_custom_call.1} parent=5 // pred_check
      _
    $region26: #{tpu_custom_call.1} parent=5 // pred_check_branch
      %161 = sbr.rel (%p158) target = $region28
    $region27: #{tpu_custom_call.1} parent=5 // pred_region
      %s162 = ssub.s32 %s8, 1
      %s163 = smul.u32 2, %s17
      %s164 = ssub.s32 3, %s163
      %p165 = scmp.lt.s32.totalorder %s164, 2
      %s166 = scalar_select %p165, %s164, 2
      %s167 = smul.u32 8, %s166
      %p168 = scmp.lt.s32.totalorder %s163, 2
      %s169 = scalar_select %p168, %s163, 2
      %p170 = scmp.lt.s32.totalorder %s18, 0
      %s171 = scalar_select %p170, %s18, 0
      %s172 = sadd.s32 %s171, %s169
      %s173 = smul.addr %s172, 8
      %s174 = scalar_lea.vmem %s0, %s173
      %p175 = pneg %p48
      %p176 = pneg %p45
      %s177 = smul.u32 2, %s17
      %s178 = ssub.s32 3, %s177
      %p179 = scmp.lt.s32.totalorder %s178, 2
      %s180 = scalar_select %p179, %s178, 2
      %s181 = smul.u32 8, %s180
      %p182 = scmp.lt.s32.totalorder %s177, 2
      %s183 = scalar_select %p182, %s177, 2
      %s184 = smul.addr %s183, 8
      %s185 = scalar_lea.vmem %s1, %s184
      %p186 = pneg %p74
      %p187 = pneg %p71
      %p188 = pneg %p100
      %p189 = pneg %p97
      %s190 = smul.u32 2, %s17
      %p191 = scmp.lt.s32.totalorder %s190, 3
      %s192 = scalar_select %p191, %s190, 3
      %s193 = smul.addr %s192, 8
      %s194 = scalar_lea.vmem %s2, %s193
      %s195 = smul.u32 2, %s17
      %s196 = ssub.s32 3, %s195
      %p197 = scmp.lt.s32.totalorder %s196, 2
      %s198 = scalar_select %p197, %s196, 2
      %s199 = smul.u32 8, %s198
      %p200 = scmp.lt.s32.totalorder %s195, 2
      %s201 = scalar_select %p200, %s195, 2
      %p202 = scmp.lt.s32.totalorder %s18, 0
      %s203 = scalar_select %p202, %s18, 0
      %s204 = sadd.s32 %s203, %s201
      %s205 = smul.addr %s204, 8
      %s206 = scalar_lea.vmem %s0, %s205
      %s207 = smul.u32 2, %s17
      %s208 = ssub.s32 3, %s207
      %p209 = scmp.lt.s32.totalorder %s208, 2
      %s210 = scalar_select %p209, %s208, 2
      %s211 = smul.u32 8, %s210
      %s212 = smul.u32 2, %s17
      %s213 = ssub.s32 3, %s212
      %p214 = scmp.lt.s32.totalorder %s213, 2
      %s215 = scalar_select %p214, %s213, 2
      %s216 = smul.u32 8, %s215
      %p217 = scmp.lt.s32.totalorder %s212, 2
      %s218 = scalar_select %p217, %s212, 2
      %s219 = smul.addr %s218, 8
      %s220 = scalar_lea.vmem %s1, %s219
      %s221 = smul.u32 2, %s17
      %s222 = ssub.s32 3, %s221
      %p223 = scmp.lt.s32.totalorder %s222, 2
      %s224 = scalar_select %p223, %s222, 2
      %s225 = smul.u32 8, %s224
      %s226 = smul.u32 2, %s17
      %p227 = scmp.lt.s32.totalorder %s226, 3
      %s228 = scalar_select %p227, %s226, 3
      %s229 = smul.addr %s228, 8
      %s230 = scalar_lea.vmem %s2, %s229
      %s231 = smul.u32 2, %s17
      %p232 = scmp.eq.s32.totalorder %s18, 0
      // Predicated region
      $region29: #{tpu_custom_call.1} parent=27 // pred_check
        %p233 = pneg %p232
      $region30: #{tpu_custom_call.1} parent=27 // pred_check_branch
        %235 = sbr.rel (%p233) target = $region32
      $region31: #{tpu_custom_call.1} parent=27 // pred_region
        %vm236 = vcmask 7168
        %237 = vst.msk [vmem:[#allocation2] sm:$0xff] %vm236, -inf
        %238 = vst.msk [vmem:[#allocation2 + $0x8] sm:$0xff] %vm236, -inf
        %239 = vst.msk [vmem:[#allocation3] sm:$0xff] %vm236, 0.0
        %240 = vst.msk [vmem:[#allocation3 + $0x8] sm:$0xff] %vm236, 0.0
        %241 = vst.msk [vmem:[#allocation4] sm:$0xff] %vm236, 0.0
        %242 = vst.msk [vmem:[#allocation4 + $0x8] sm:$0xff] %vm236, 0.0
        %243 = vst.msk [vmem:[#allocation5] sm:$0xff] %vm236, 0.0
        %244 = vst.msk [vmem:[#allocation5 + $0x8] sm:$0xff] %vm236, 0.0
      $region32: #{tpu_custom_call.1} parent=27 // pred_fallthru
        _
      %v245 = vld [vmem:[%s220] sm:$0xff]
      %v246 = vld [vmem:[%s220 + $0x8] sm:$0xff]
      %s247 = smul.u32 %s18, 128
      %v248 = vlaneseq
      %v249 = vand.u32 %v248, 127
      %v250 = vld [vmem:[%s206] sm:$0xff]
      %v251 = vld [vmem:[%s206 + $0x8] sm:$0xff]
      %s252 = sadd.s32 %s247, 0
      %v253 = vstv %s252
      %v254 = vadd.s32 %v249, %v253
      %vm255 = vcmp.lt.s32.totalorder %v254, 37
      %v256 = vsel %vm255, %v250, -inf
      %v257 = vsel %vm255, %v251, -inf
      %258 = vmax.xlane.f32.xlu0 %v256
      %v259 = vpop.xlane.xlu0 %258
      %260 = vmax.xlane.f32.xlu0 %v257
      %v261 = vpop.xlane.xlu0 %260
      %v262 = vsel %vm255, %v250, 0.0
      %v263 = vsel %vm255, %v251, 0.0
      %264 = vadd.xlane.f32.xlu0 %v262
      %v265 = vpop.xlane.xlu0 %264
      %266 = vadd.xlane.f32.xlu0 %v263
      %v267 = vpop.xlane.xlu0 %266
      %v268 = vadd.f32 %v265, 0.0
      %v269 = vadd.f32 %v267, 0.0
      %270 = vset.pattern.permute.xlu0 0
      %271 = vperm.xlu0 %270, %v245
      %v272 = vpop.permute.xlu0 %271
      %273 = vset.pattern.permute.xlu0 0
      %274 = vperm.xlu0 %273, %v246
      %v275 = vpop.permute.xlu0 %274
      %vm276 = vcmp.eq.s32.totalorder %v254, %v272
      %vm277 = vcmp.eq.s32.totalorder %v254, %v275
      %v278 = vsel %vm276, %v250, 0.0
      %v279 = vsel %vm277, %v251, 0.0
      %280 = vadd.xlane.f32.xlu0 %v278
      %v281 = vpop.xlane.xlu0 %280
      %282 = vadd.xlane.f32.xlu0 %v279
      %v283 = vpop.xlane.xlu0 %282
      %v284 = vadd.f32 %v281, 0.0
      %v285 = vadd.f32 %v283, 0.0
      %v286 = vld [vmem:[#allocation2] sm:$0xff]
      %v287 = vld [vmem:[#allocation2 + $0x8] sm:$0xff]
      %v288 = vmax.f32 %v286, %v259
      %v289 = vmax.f32 %v287, %v261
      %291 = vset.pattern.permute.xlu0 0
      %292 = vperm.xlu0 %291, %v288
      %v293 = vpop.permute.xlu0 %292
      %296 = vset.pattern.permute.xlu0 0
      %297 = vperm.xlu0 %296, %v289
      %v298 = vpop.permute.xlu0 %297
      %v300 = vsub.f32 %v250, %v293
      %v301 = vsub.f32 %v251, %v298
      %v302 = vmul.f32 %v300, 1.442695
      %v303 = vpow.pop %v302
      %v304 = vmul.f32 %v301, 1.442695
      %v305 = vpow.pop %v304
      %v306 = vsel %vm255, %v303, 0.0
      %v307 = vsel %vm255, %v305, 0.0
      %308 = vadd.xlane.f32.xlu0 %v306
      %v309 = vpop.xlane.xlu0 %308
      %310 = vadd.xlane.f32.xlu0 %v307
      %v311 = vpop.xlane.xlu0 %310
      %v312 = vadd.f32 %v309, 0.0
      %v313 = vadd.f32 %v311, 0.0
      %v314 = vld [vmem:[#allocation3] sm:$0xff]
      %v315 = vld [vmem:[#allocation3 + $0x8] sm:$0xff]
      %v316 = vsub.f32 %v286, %v288
      %v317 = vsub.f32 %v287, %v289
      %v318 = vmul.f32 %v316, 1.442695
      %v319 = vpow.pop %v318
      %v320 = vmul.f32 %v317, 1.442695
      %v321 = vpow.pop %v320
      %v322 = vmul.f32 %v314, %v319
      %v323 = vmul.f32 %v315, %v321
      %v324 = vadd.f32 %v322, %v312
      %v325 = vadd.f32 %v323, %v313
      %vm326 = vcmask 7168
      %327 = vst.msk [vmem:[#allocation3] sm:$0xff] %vm326, %v324
      %328 = vst.msk [vmem:[#allocation3 + $0x8] sm:$0xff] %vm326, %v325
      %329 = vst.msk [vmem:[#allocation2] sm:$0xff] %vm326, %v288
      %330 = vst.msk [vmem:[#allocation2 + $0x8] sm:$0xff] %vm326, %v289
      %v331 = vld [vmem:[#allocation4] sm:$0xff]
      %v332 = vld [vmem:[#allocation4 + $0x8] sm:$0xff]
      %v333 = vadd.f32 %v331, %v268
      %v334 = vadd.f32 %v332, %v269
      %335 = vst.msk [vmem:[#allocation4] sm:$0xff] %vm326, %v333
      %336 = vst.msk [vmem:[#allocation4 + $0x8] sm:$0xff] %vm326, %v334
      %v337 = vld [vmem:[#allocation5] sm:$0xff]
      %v338 = vld [vmem:[#allocation5 + $0x8] sm:$0xff]
      %v339 = vadd.f32 %v337, %v284
      %v340 = vadd.f32 %v338, %v285
      %341 = vst.msk [vmem:[#allocation5] sm:$0xff] %vm326, %v339
      %342 = vst.msk [vmem:[#allocation5 + $0x8] sm:$0xff] %vm326, %v340
      // Predicated region
      $region33: #{tpu_custom_call.1} parent=27 // pred_check
        %p343 = pneg %p232
      $region34: #{tpu_custom_call.1} parent=27 // pred_check_branch
        %345 = sbr.rel (%p343) target = $region36
      $region35: #{tpu_custom_call.1} parent=27 // pred_region
        %v346 = vld [vmem:[#allocation2] sm:$0xff]
        %v347 = vld [vmem:[#allocation2 + $0x8] sm:$0xff]
        %v348 = vld [vmem:[#allocation3] sm:$0xff]
        %v349 = vld [vmem:[#allocation3 + $0x8] sm:$0xff]
        %v350 = vlog2.pop %v348
        %v351 = vmul.f32 %v350, 0.6931472
        %v352 = vlog2.pop %v349
        %v353 = vmul.f32 %v352, 0.6931472
        %v354 = vadd.f32 %v346, %v351
        %v355 = vadd.f32 %v347, %v353
        %v356 = vld [vmem:[#allocation5] sm:$0xff]
        %v357 = vld [vmem:[#allocation5 + $0x8] sm:$0xff]
        %v358 = vmul.f32 %v356, 0.9
        %v359 = vmul.f32 %v357, 0.9
        %v360 = vsub.f32 %v354, %v358
        %v361 = vsub.f32 %v355, %v359
        %v362 = vld [vmem:[#allocation4] sm:$0xff]
        %v363 = vld [vmem:[#allocation4 + $0x8] sm:$0xff]
        %v364 = vmul.f32 %v362, 0.0027027028
        %v365 = vmul.f32 %v363, 0.0027027028
        %v366 = vsub.f32 %v360, %v364
        %v367 = vsub.f32 %v361, %v365
        %s368 = smul.u32 %s17, 16
        %v369 = vlaneseq
        %v370 = vshrl.u32 %v369, 7
        %v371 = vadd.s32 %v370, 8
        %v372 = vstv %s368
        %v373 = vadd.s32 %v372, %v370
        %v374 = vadd.s32 %v372, %v371
        %vm375 = vcmp.lt.s32.totalorder %v373, 20
        %vm376 = vcmp.lt.s32.totalorder %v374, 20
        %v377 = vsel %vm375, %v366, 0.0
        %v378 = vsel %vm376, %v367, 0.0
        %379 = vst.msk [vmem:[%s230] sm:$0xff] %vm326, %v377
        %380 = vst.msk [vmem:[%s230 + $0x8] sm:$0xff] %vm326, %v378
      $region36: #{tpu_custom_call.1} parent=27 // pred_fallthru
        _
      %s381 = smul.u32 2, %s17
      %p382 = scmp.lt.s32.totalorder %s381, 3
      %s383 = scalar_select %p382, %s381, 3
      %s384 = smul.addr %s383, 8
      %s385 = scalar_lea.vmem %s2, %s384
      // Predicated region
      $region37: #{tpu_custom_call.1} parent=27 // pred_check
        %p386 = pneg %p97
      $region38: #{tpu_custom_call.1} parent=27 // pred_check_branch
        %388 = sbr.rel (%p386) target = $region40
      $region39: #{tpu_custom_call.1} parent=27 // pred_region
        %s389 = smul.u32 2, %s17
      $region40: #{tpu_custom_call.1} parent=27 // pred_fallthru
        _
    $region28: #{tpu_custom_call.1} parent=5 // pred_fallthru
      _
    %p390 = scmp.le.s32.totalorder 2, %s8
    // Predicated region
    $region41: #{tpu_custom_call.1} parent=5 // pred_check
      %p391 = pneg %p390
    $region42: #{tpu_custom_call.1} parent=5 // pred_check_branch
      %393 = sbr.rel (%p391) target = $region44
    $region43: #{tpu_custom_call.1} parent=5 // pred_region
      %s394 = ssub.s32 %s8, 2
      // Predicated region
      $region45: #{tpu_custom_call.1} parent=43 // pred_check
        %p395 = pneg %p103
      $region46: #{tpu_custom_call.1} parent=43 // pred_check_branch
        %397 = sbr.rel (%p395) target = $region48
      $region47: #{tpu_custom_call.1} parent=43 // pred_region
        %s398 = smul.u32 2, %s19
        %p399 = scmp.lt.s32.totalorder %s398, 3
        %s400 = scalar_select %p399, %s398, 3
        %s401 = smul.addr %s400, 8
        %s402 = scalar_lea.vmem %s2, %s401
      $region48: #{tpu_custom_call.1} parent=43 // pred_fallthru
        _
    $region44: #{tpu_custom_call.1} parent=5 // pred_fallthru
      _
  $region6: #{tpu_custom_call.1} parent=0 // loop_footer
    %s12 = sadd.s32 1, %s8
  $region7: #{tpu_custom_call.1} parent=0 // loop_footer_branch
    %7 = sbr.rel target = $region3
  $region8: #{tpu_custom_call.1} parent=0 // loop_exit
    _

</llo_original>
